<compile_context>
chip_gen: v7x
topology: tpu7x:2x2x1
jax: 0.10.0
libtpu: 0.0.40
codegen_flags: <defaults>
</compile_context>

<pallas_src>
import jax
import jax.numpy as jnp
from jax.experimental import pallas as pl
from jax.experimental.pallas import tpu as pltpu

P_VALUE = 1e-8
LANES = 128


def _round_up(a, b):
    return ((a + b - 1) // b) * b


def _pick_tile_rows(r_raw, c):
    """Rows (sublane groups) per grid step: multiple of 8, VMEM-guided cap."""
    cap = max(8, ((512 // max(c, 1)) // 8) * 8)  # fewer rows per step as C grows
    cap = min(cap, 256)
    return min(_round_up(r_raw, 8), cap)


def _gumbel_sigmoid_kernel(temp_ref, x_ref, noise_ref, o_ref):
    """One grid step == one (batch, row-tile) block.

    temp_ref : (1,) float32 in SMEM (current temperature)
    x_ref    : (1, C, TR, 128)  VMEM block of keep-probabilities
    noise_ref: (1, 2C, TR, 128) VMEM block of uniform [0,1) noise
    o_ref    : (1, TR, 128)     VMEM output block (channel-0 softmax prob)
    """
    c = x_ref.shape[1]
    inv_t = 1.0 / (temp_ref[0] + P_VALUE)

    x = x_ref[0].astype(jnp.float32)          # (C, TR, 128)   P(keep)
    u = noise_ref[0].astype(jnp.float32)      # (2C, TR, 128)  uniform noise

    # Gumbel noise exactly as in the PyTorch code: g = -log(-log(U + p) + p)
    g = -jnp.log(-jnp.log(u + P_VALUE) + P_VALUE)

    log_keep = jnp.log(x + P_VALUE)
    log_drop = jnp.log((1.0 - x) + P_VALUE)

    a = (log_keep + g[:c]) * inv_t            # "keep" logits (C, TR, 128)
    b = (log_drop + g[c:]) * inv_t            # "drop" logits (C, TR, 128)

    if c == 1:
        # softmax over 2 channels == sigmoid of the logit difference.
        # Numerically stable: one exp per element, no channel reduction.
        d = a[0] - b[0]
        z = jnp.exp(-jnp.abs(d))
        r = 1.0 / (1.0 + z)
        out = jnp.where(d >= 0.0, r, z * r)
    else:
        # softmax over the 2C concatenated channels; keep channel 0.
        m = jnp.maximum(jnp.max(a, axis=0), jnp.max(b, axis=0))   # (TR, 128)
        ea = jnp.exp(a - m)
        eb = jnp.exp(b - m)
        denom = jnp.sum(ea, axis=0) + jnp.sum(eb, axis=0)
        out = ea[0] / denom

    o_ref[0] = out.astype(o_ref.dtype)


def gumbel_sigmoid_forward(x_nchw, temperature, key):
    """x_nchw: (B, C, H, W) keep-probabilities -> (B, H, W) relaxed samples."""
    B, C, H, W = x_nchw.shape
    L = H * W
    r_raw = -(-L // LANES)
    tile_rows = _pick_tile_rows(r_raw, C)
    R = _round_up(r_raw, tile_rows)

    # Pad spatial axis to a lane/sublane-dense (R, 128) view (pad value 0.5 is
    # benign; padded outputs are sliced away below).
    x3 = x_nchw.reshape(B, C, L)
    pad = R * LANES - L
    if pad:
        x3 = jnp.pad(x3, ((0, 0), (0, 0), (0, pad)), constant_values=0.5)
    x4 = x3.reshape(B, C, R, LANES)

    # torch.rand_like equivalents for the "keep" and "drop" halves.
    noise = jax.random.uniform(key, (B, 2 * C, R, LANES), dtype=jnp.float32)
    temp_arr = jnp.asarray([temperature], dtype=jnp.float32)

    out = pl.pallas_call(
        _gumbel_sigmoid_kernel,
        out_shape=jax.ShapeDtypeStruct((B, R, LANES), x_nchw.dtype),
        grid=(B, R // tile_rows),
        in_specs=[
            pl.BlockSpec(memory_space=pltpu.MemorySpace.SMEM),           # temperature
            pl.BlockSpec((1, C, tile_rows, LANES), lambda b, r: (b, 0, r, 0)),
            pl.BlockSpec((1, 2 * C, tile_rows, LANES), lambda b, r: (b, 0, r, 0)),
        ],
        out_specs=pl.BlockSpec((1, tile_rows, LANES), lambda b, r: (b, r, 0)),
        compiler_params=pltpu.CompilerParams(
            dimension_semantics=("parallel", "parallel")),
    )(temp_arr, x4, noise)

    return out.reshape(B, R * LANES)[:, :L].reshape(B, H, W)


def gumbel_sigmoid_reference(x_nchw, temperature, key):
    """Pure-JAX reference (same noise stream / padding layout as the kernel)."""
    B, C, H, W = x_nchw.shape
    L = H * W
    r_raw = -(-L // LANES)
    tile_rows = _pick_tile_rows(r_raw, C)
    R = _round_up(r_raw, tile_rows)

    u = jax.random.uniform(key, (B, 2 * C, R, LANES), dtype=jnp.float32)
    u = u.reshape(B, 2 * C, R * LANES)[:, :, :L]
    g = -jnp.log(-jnp.log(u + P_VALUE) + P_VALUE)

    x = x_nchw.reshape(B, C, L).astype(jnp.float32)
    t = temperature + P_VALUE
    a = (jnp.log(x + P_VALUE) + g[:, :C]) / t
    b = (jnp.log(1.0 - x + P_VALUE) + g[:, C:]) / t
    sm = jax.nn.softmax(jnp.concatenate([a, b], axis=1), axis=1)
    return sm[:, 0].reshape(B, H, W)


class GumbelSigmoid:
    """JAX/Pallas port of the PyTorch GumbelSigmoid mask module.

    Temperature state (cur_T buffer) is kept host-side, mirroring the
    register_buffer + in-place decay in the PyTorch module.
    """

    def __init__(self, max_T, decay_alpha):
        self.max_T = float(max_T)
        self.decay_alpha = float(decay_alpha)
        self.p_value = P_VALUE
        self.cur_T = float(max_T)
        self.training = True

    def __call__(self, x, seed):
        cur_T = self.cur_T if self.training else 0.03
        out = gumbel_sigmoid_forward(x, cur_T, jax.random.PRNGKey(seed))
        if self.training:
            self.cur_T = self.cur_T * self.decay_alpha
        return out


if __name__ == "__main__":
    root = jax.random.PRNGKey(0)
    kx1, kx2 = jax.random.split(root)

    # ---- Multi-channel case (general 2C-softmax path), x: (2, 4, 16, 16) ----
    x_mc = jax.random.uniform(kx1, (2, 4, 16, 16), dtype=jnp.float32)
    y_mc = jax.block_until_ready(
        gumbel_sigmoid_forward(x_mc, 1.0, jax.random.PRNGKey(1234)))
    y_mc_ref = gumbel_sigmoid_reference(x_mc, 1.0, jax.random.PRNGKey(1234))
    assert y_mc.shape == (2, 16, 16)
    assert bool(jnp.all(jnp.isfinite(y_mc)))
    assert bool(jnp.all((y_mc >= 0.0) & (y_mc <= 1.0)))
    assert bool(jnp.allclose(y_mc, y_mc_ref, atol=1e-4, rtol=1e-4))

    # ---- Canonical single-channel mask (sigmoid fast path, L not 128-aligned) ----
    module = GumbelSigmoid(max_T=1.0, decay_alpha=0.998)
    x_sc = jax.random.uniform(kx2, (2, 1, 14, 14), dtype=jnp.float32)

    y_train = jax.block_until_ready(module(x_sc, seed=7))       # training mode
    y_train_ref = gumbel_sigmoid_reference(x_sc, 1.0, jax.random.PRNGKey(7))
    assert y_train.shape == (2, 14, 14)
    assert bool(jnp.all(jnp.isfinite(y_train)))
    assert bool(jnp.all((y_train >= 0.0) & (y_train <= 1.0)))
    assert bool(jnp.allclose(y_train, y_train_ref, atol=1e-4, rtol=1e-4))
    assert abs(module.cur_T - 1.0 * 0.998) < 1e-9

    module.training = False                                      # eval mode (T = 0.03)
    y_eval = jax.block_until_ready(module(x_sc, seed=11))
    assert y_eval.shape == (2, 14, 14)
    assert bool(jnp.all(jnp.isfinite(y_eval)))
    assert bool(jnp.all((y_eval >= 0.0) & (y_eval <= 1.0)))

    print("KERNEL_OK")
</pallas_src>

<mosaic_0001>
module attributes {stable_mosaic.version = 11 : i64} {
  func.func @_gumbel_sigmoid_kernel(%arg0: i32, %arg1: i32, %arg2: memref<1xf32, #tpu.memory_space<smem>>, %arg3: memref<1x4x8x128xf32, #tpu.memory_space<vmem>>, %arg4: memref<1x8x8x128xf32, #tpu.memory_space<vmem>>, %arg5: memref<1x8x128xf32, #tpu.memory_space<vmem>>) attributes {dimension_semantics = [#tpu.dimension_semantics<parallel>, #tpu.dimension_semantics<parallel>], iteration_bounds = array<i64: 2, 1>, scalar_prefetch = 0 : i64, scratch_operands = 0 : i64, tpu.core_type = #tpu.core_type<tc>, window_params = [{transform_indices = @transform_0, window_bounds = array<i64: 1>}, {transform_indices = @transform_1, window_bounds = array<i64: 1, 4, 8, 128>}, {transform_indices = @transform_2, window_bounds = array<i64: 1, 8, 8, 128>}, {transform_indices = @transform_3, window_bounds = array<i64: 1, 8, 128>}]} {
    %c0 = arith.constant 0 : index
    %0 = memref.load %arg2[%c0] : memref<1xf32, #tpu.memory_space<smem>>
    %cst = arith.constant 9.99999993E-9 : f32
    %1 = arith.addf %0, %cst : f32
    %cst_0 = arith.constant 1.000000e+00 : f32
    %2 = arith.divf %cst_0, %1 : f32
    %c0_1 = arith.constant 0 : index
    %c0_2 = arith.constant 0 : index
    %c0_3 = arith.constant 0 : index
    %c0_4 = arith.constant 0 : index
    %3 = vector.load %arg3[%c0_1, %c0_2, %c0_3, %c0_4] : memref<1x4x8x128xf32, #tpu.memory_space<vmem>>, vector<1x4x8x128xf32>
    %4 = vector.shape_cast %3 : vector<1x4x8x128xf32> to vector<4x8x128xf32>
    %c0_5 = arith.constant 0 : index
    %c0_6 = arith.constant 0 : index
    %c0_7 = arith.constant 0 : index
    %c0_8 = arith.constant 0 : index
    %5 = vector.load %arg4[%c0_5, %c0_6, %c0_7, %c0_8] : memref<1x8x8x128xf32, #tpu.memory_space<vmem>>, vector<1x8x8x128xf32>
    %6 = vector.shape_cast %5 : vector<1x8x8x128xf32> to vector<8x8x128xf32>
    %cst_9 = arith.constant 9.99999993E-9 : f32
    %7 = vector.broadcast %cst_9 : f32 to vector<8x8x128xf32>
    %8 = arith.addf %6, %7 : vector<8x8x128xf32>
    %9 = math.log %8 : vector<8x8x128xf32>
    %cst_10 = arith.constant 0.000000e+00 : f32
    %10 = vector.broadcast %cst_10 : f32 to vector<8x8x128xf32>
    %11 = arith.subf %10, %9 : vector<8x8x128xf32>
    %cst_11 = arith.constant 9.99999993E-9 : f32
    %12 = vector.broadcast %cst_11 : f32 to vector<8x8x128xf32>
    %13 = arith.addf %11, %12 : vector<8x8x128xf32>
    %14 = math.log %13 : vector<8x8x128xf32>
    %cst_12 = arith.constant 0.000000e+00 : f32
    %15 = vector.broadcast %cst_12 : f32 to vector<8x8x128xf32>
    %16 = arith.subf %15, %14 : vector<8x8x128xf32>
    %cst_13 = arith.constant 9.99999993E-9 : f32
    %17 = vector.broadcast %cst_13 : f32 to vector<4x8x128xf32>
    %18 = arith.addf %4, %17 : vector<4x8x128xf32>
    %19 = math.log %18 : vector<4x8x128xf32>
    %cst_14 = arith.constant 1.000000e+00 : f32
    %20 = vector.broadcast %cst_14 : f32 to vector<4x8x128xf32>
    %21 = arith.subf %20, %4 : vector<4x8x128xf32>
    %cst_15 = arith.constant 9.99999993E-9 : f32
    %22 = vector.broadcast %cst_15 : f32 to vector<4x8x128xf32>
    %23 = arith.addf %21, %22 : vector<4x8x128xf32>
    %24 = math.log %23 : vector<4x8x128xf32>
    %25 = vector.extract_strided_slice %16 {offsets = [0, 0, 0], sizes = [4, 8, 128], strides = [1, 1, 1]} : vector<8x8x128xf32> to vector<4x8x128xf32>
    %26 = arith.addf %19, %25 : vector<4x8x128xf32>
    %27 = vector.broadcast %2 : f32 to vector<4x8x128xf32>
    %28 = arith.mulf %26, %27 : vector<4x8x128xf32>
    %29 = vector.extract_strided_slice %16 {offsets = [4, 0, 0], sizes = [4, 8, 128], strides = [1, 1, 1]} : vector<8x8x128xf32> to vector<4x8x128xf32>
    %30 = arith.addf %24, %29 : vector<4x8x128xf32>
    %31 = vector.broadcast %2 : f32 to vector<4x8x128xf32>
    %32 = arith.mulf %30, %31 : vector<4x8x128xf32>
    %cst_16 = arith.constant dense<0xFF800000> : vector<8x128xf32>
    %33 = vector.multi_reduction <maximumf>, %28, %cst_16 [0] : vector<4x8x128xf32> to vector<8x128xf32>
    %cst_17 = arith.constant dense<0xFF800000> : vector<8x128xf32>
    %34 = vector.multi_reduction <maximumf>, %32, %cst_17 [0] : vector<4x8x128xf32> to vector<8x128xf32>
    %35 = arith.maximumf %33, %34 : vector<8x128xf32>
    %36 = vector.shape_cast %35 : vector<8x128xf32> to vector<1x8x128xf32>
    %37 = vector.broadcast %36 : vector<1x8x128xf32> to vector<4x8x128xf32>
    %38 = arith.subf %28, %37 : vector<4x8x128xf32>
    %39 = math.exp %38 : vector<4x8x128xf32>
    %40 = vector.shape_cast %35 : vector<8x128xf32> to vector<1x8x128xf32>
    %41 = vector.broadcast %40 : vector<1x8x128xf32> to vector<4x8x128xf32>
    %42 = arith.subf %32, %41 : vector<4x8x128xf32>
    %43 = math.exp %42 : vector<4x8x128xf32>
    %cst_18 = arith.constant dense<0.000000e+00> : vector<8x128xf32>
    %44 = vector.multi_reduction <add>, %39, %cst_18 [0] : vector<4x8x128xf32> to vector<8x128xf32>
    %cst_19 = arith.constant dense<0.000000e+00> : vector<8x128xf32>
    %45 = vector.multi_reduction <add>, %43, %cst_19 [0] : vector<4x8x128xf32> to vector<8x128xf32>
    %46 = arith.addf %44, %45 : vector<8x128xf32>
    %47 = vector.extract_strided_slice %39 {offsets = [0, 0, 0], sizes = [1, 8, 128], strides = [1, 1, 1]} : vector<4x8x128xf32> to vector<1x8x128xf32>
    %48 = vector.shape_cast %47 : vector<1x8x128xf32> to vector<8x128xf32>
    %49 = arith.divf %48, %46 : vector<8x128xf32>
    %c0_20 = arith.constant 0 : index
    %c0_21 = arith.constant 0 : index
    %c0_22 = arith.constant 0 : index
    %50 = vector.load %arg5[%c0_20, %c0_21, %c0_22] : memref<1x8x128xf32, #tpu.memory_space<vmem>>, vector<1x8x128xf32>
    %51 = vector.shape_cast %50 : vector<1x8x128xf32> to vector<8x128xf32>
    %52 = vector.shape_cast %49 : vector<8x128xf32> to vector<1x8x128xf32>
    tpu.vector_store %arg5[%c0_20, %c0_21, %c0_22], %52 {strides = array<i32>} : memref<1x8x128xf32, #tpu.memory_space<vmem>>, vector<1x8x128xf32>,
    return
  }
  func.func @transform_0(%arg0: i32, %arg1: i32) -> i32 {
    %c0_i32 = arith.constant 0 : i32
    %c0_i32_0 = arith.constant 0 : i32
    return %c0_i32 : i32
  }
  func.func @transform_1(%arg0: i32, %arg1: i32) -> (i32, i32, i32, i32) {
    %c0_i32 = arith.constant 0 : i32
    %c0_i32_0 = arith.constant 0 : i32
    %c0_i32_1 = arith.constant 0 : i32
    return %arg0, %c0_i32, %arg1, %c0_i32_0 : i32, i32, i32, i32
  }
  func.func @transform_2(%arg0: i32, %arg1: i32) -> (i32, i32, i32, i32) {
    %c0_i32 = arith.constant 0 : i32
    %c0_i32_0 = arith.constant 0 : i32
    %c0_i32_1 = arith.constant 0 : i32
    return %arg0, %c0_i32, %arg1, %c0_i32_0 : i32, i32, i32, i32
  }
  func.func @transform_3(%arg0: i32, %arg1: i32) -> (i32, i32, i32) {
    %c0_i32 = arith.constant 0 : i32
    %c0_i32_0 = arith.constant 0 : i32
    return %arg0, %arg1, %c0_i32 : i32, i32, i32
  }
}

</mosaic_0001>

<llo_original>
// kernel: tpu_custom_call.1
$region0: #{tpu_custom_call.1}
  #allocation0 [shape = 'u32[]', space=smem, size = 0x4, offset = 0x4, fixed_abs, tag = 'smem constant byte address 0x4 - core index']
  #allocation1 [shape = 'u32[144,128]{1,0:T(1,128)}', space=vmem, size = 0x12000, scoped, tag = 'internal scratch']
  #allocation2 [shape = 'f32[1]{0:T(128)S(6)}', space=smem, size = 0x200, scoped, tag = 'scoped memory for tpu_custom_call.1']
  %s0 = inlined_call_operand.<no memory space> [shape: f32[1], index: 0, kind: input, shape index: {}]
  %s1 = inlined_call_operand.hbm [shape: f32[2,4,8,128], index: 1, kind: input, shape index: {}]
  %s2 = inlined_call_operand.hbm [shape: f32[2,8,8,128], index: 2, kind: input, shape index: {}]
  %s3 = inlined_call_operand.hbm [shape: f32[2,8,128], index: 3, kind: output, shape index: {}]
  %s4 = sld [smem:[#allocation0]]
  $region53: #{tpu_custom_call.1} parent=0
    _
  %s6 = ssub.s32 1, %s4
  %s7 = scalar_select 0, %s6, %s4
  %8 = sst [smem:[#allocation2]] %s0
  $region1: #{tpu_custom_call.1} parent=0
    #allocation3 [shape = 'u8[32768]{0}', space=vmem, size = 0x8000, scoped, tag = 'input window, operand 1']
    #allocation4 [shape = 's32[2]{0}', space=sflag, size = 0x8, scoped, tag = 'scoped memory for tpu_custom_call.1']
    #allocation5 [shape = 's32[2]{0}', space=sflag, size = 0x8, scoped, tag = 'scoped memory for tpu_custom_call.1']
    #allocation6 [shape = 'u8[65536]{0}', space=vmem, size = 0x10000, scoped, tag = 'input window, operand 2']
    #allocation7 [shape = 's32[2]{0}', space=sflag, size = 0x8, scoped, tag = 'scoped memory for tpu_custom_call.1']
    #allocation8 [shape = 'u8[8192]{0}', space=vmem, size = 0x2000, scoped, tag = 'output window, operand 0']
    %9 = vsyncpa [#allocation4], 0
    %s10 = scalar_lea.sflag [#allocation4], 1
    %11 = vsyncpa %s10, 0
    %12 = vsyncpa [#allocation7], 0
    %s13 = scalar_lea.sflag [#allocation7], 1
    %14 = vsyncpa %s13, 0
    %15 = vsyncpa [#allocation5], 0
    %s16 = scalar_lea.sflag [#allocation5], 1
    %17 = vsyncpa %s16, 0
    loop: start=0, step=1, limit=4
    $region2: #{tpu_custom_call.1} parent=1 // loop_pre_header
      _
    $region3: #{tpu_custom_call.1} parent=1 // loop_header
      %s19 = sphi 0, %s23
      %p20 = scmp.ge.s32.totalorder %s19, 4
      %s26 = sphi 0, %s38
      %s27 = sphi 0, %s34
      %s28 = sphi 0, %s26
      %s29 = sphi 0, %s27
      %s30 = sphi 0, %s28
      %s31 = sphi 0, %s29
      %s39 = sphi 0, %s39
      %s41 = sphi 0, %s39
      %s42 = sphi 0, %s41
      %s56 = sphi 0, %s42
      %s64 = sphi 0, %s66
      %s67 = sphi 0, %s64
      %s68 = sphi 0, %s67
      %s84 = sphi 0, %s68
      %s92 = sphi 0, %s94
      %s95 = sphi 0, %s92
      %s96 = sphi 0, %s95
      %s112 = sphi 0, %s96
      %s120 = sphi 0, %s122
      %s123 = sphi 0, %s120
      %s124 = sphi 0, %s123
      %s140 = sphi 0, %s124
    $region4: #{tpu_custom_call.1} parent=1 // loop_header_branch
      %22 = sbr.rel (%p20) target = $region8
    $region5: #{tpu_custom_call.1} parent=1 // loop_body
      %s24 = ssub.s32 %s19, 1
      %s25 = ssub.s32 %s19, 2
      %s32 = sadd.s32 1, %s27
      %p33 = scmp.ge.s32.totalorder %s32, 1
      %s34 = scalar_select %p33, 0, %s32
      %s35 = sadd.s32 1, %s26
      %s36 = scalar_select %p33, %s35, %s26
      %p37 = scmp.ge.s32.totalorder %s36, 2
      %s38 = scalar_select %p37, 0, %s36
      %s40 = sadd.s32 %s39, 1
      %p43 = scmp.eq.s32.totalorder %s19, 1
      %p44 = scmp.ne.s32.totalorder %s39, %s41
      %p45 = scmp.eq.s32.totalorder %s19, 0
      %p46 = por %p44, %p45
      %p47 = scmp.ne.s32.totalorder %s39, %s41
      %p48 = scmp.eq.s32.totalorder %s24, 1
      %p49 = por %p47, %p48
      %p50 = scmp.ne.s32.totalorder %s41, %s42
      %p51 = scmp.eq.s32.totalorder %s24, 0
      %p52 = por %p50, %p51
      %p53 = scmp.ne.s32.totalorder %s41, %s42
      %p54 = scmp.eq.s32.totalorder %s25, 1
      %p55 = por %p53, %p54
      %p57 = scmp.ne.s32.totalorder %s42, %s56
      %p58 = scmp.eq.s32.totalorder %s25, 0
      %p59 = por %p57, %p58
      %s60 = ssub.s32 %s26, %s38
      %s61 = ssub.s32 %s27, %s34
      %s62 = sor.u32 %s60, %s61
      %p63 = scmp.eq.s32.totalorder %s62, 0
      %s65 = sadd.s32 %s64, 1
      %s66 = scalar_select %p63, %s64, %s65
      %p69 = pneg %p63
      %p70 = scmp.eq.s32.totalorder %s19, 1
      %p71 = por %p69, %p70
      %p72 = scmp.ne.s32.totalorder %s64, %s67
      %p73 = scmp.eq.s32.totalorder %s19, 0
      %p74 = por %p72, %p73
      %p75 = scmp.ne.s32.totalorder %s64, %s67
      %p76 = scmp.eq.s32.totalorder %s24, 1
      %p77 = por %p75, %p76
      %p78 = scmp.ne.s32.totalorder %s67, %s68
      %p79 = scmp.eq.s32.totalorder %s24, 0
      %p80 = por %p78, %p79
      %p81 = scmp.ne.s32.totalorder %s67, %s68
      %p82 = scmp.eq.s32.totalorder %s25, 1
      %p83 = por %p81, %p82
      %p85 = scmp.ne.s32.totalorder %s68, %s84
      %p86 = scmp.eq.s32.totalorder %s25, 0
      %p87 = por %p85, %p86
      %s88 = ssub.s32 %s26, %s38
      %s89 = ssub.s32 %s27, %s34
      %s90 = sor.u32 %s88, %s89
      %p91 = scmp.eq.s32.totalorder %s90, 0
      %s93 = sadd.s32 %s92, 1
      %s94 = scalar_select %p91, %s92, %s93
      %p97 = pneg %p91
      %p98 = scmp.eq.s32.totalorder %s19, 1
      %p99 = por %p97, %p98
      %p100 = scmp.ne.s32.totalorder %s92, %s95
      %p101 = scmp.eq.s32.totalorder %s19, 0
      %p102 = por %p100, %p101
      %p103 = scmp.ne.s32.totalorder %s92, %s95
      %p104 = scmp.eq.s32.totalorder %s24, 1
      %p105 = por %p103, %p104
      %p106 = scmp.ne.s32.totalorder %s95, %s96
      %p107 = scmp.eq.s32.totalorder %s24, 0
      %p108 = por %p106, %p107
      %p109 = scmp.ne.s32.totalorder %s95, %s96
      %p110 = scmp.eq.s32.totalorder %s25, 1
      %p111 = por %p109, %p110
      %p113 = scmp.ne.s32.totalorder %s96, %s112
      %p114 = scmp.eq.s32.totalorder %s25, 0
      %p115 = por %p113, %p114
      %s116 = ssub.s32 %s26, %s38
      %s117 = ssub.s32 %s27, %s34
      %s118 = sor.u32 %s116, %s117
      %p119 = scmp.eq.s32.totalorder %s118, 0
      %s121 = sadd.s32 %s120, 1
      %s122 = scalar_select %p119, %s120, %s121
      %p125 = pneg %p119
      %p126 = scmp.eq.s32.totalorder %s19, 1
      %p127 = por %p125, %p126
      %p128 = scmp.ne.s32.totalorder %s120, %s123
      %p129 = scmp.eq.s32.totalorder %s19, 0
      %p130 = por %p128, %p129
      %p131 = scmp.ne.s32.totalorder %s120, %s123
      %p132 = scmp.eq.s32.totalorder %s24, 1
      %p133 = por %p131, %p132
      %p134 = scmp.ne.s32.totalorder %s123, %s124
      %p135 = scmp.eq.s32.totalorder %s24, 0
      %p136 = por %p134, %p135
      %p137 = scmp.ne.s32.totalorder %s123, %s124
      %p138 = scmp.eq.s32.totalorder %s25, 1
      %p139 = por %p137, %p138
      %p141 = scmp.ne.s32.totalorder %s124, %s140
      %p142 = scmp.eq.s32.totalorder %s25, 0
      %p143 = por %p141, %p142
      %p144 = scmp.le.s32.totalorder 1, %s19
      %p145 = scmp.lt.s32.totalorder %s19, 3
      %p146 = pnand %p144, %p145
      %p147 = pneg %p146
      // Predicated region
      $region9: #{tpu_custom_call.1} parent=5 // pred_check
        _
      $region10: #{tpu_custom_call.1} parent=5 // pred_check_branch
        %149 = sbr.rel (%p146) target = $region12
      $region11: #{tpu_custom_call.1} parent=5 // pred_region
        %s150 = ssub.s32 %s19, 1
        // Predicated region
        $region13: #{tpu_custom_call.1} parent=11 // pred_check
          %p151 = pneg %p52
        $region14: #{tpu_custom_call.1} parent=11 // pred_check_branch
          %153 = sbr.rel (%p151) target = $region16
        $region15: #{tpu_custom_call.1} parent=11 // pred_region
          _
        $region16: #{tpu_custom_call.1} parent=11 // pred_fallthru
          _
      $region12: #{tpu_custom_call.1} parent=5 // pred_fallthru
        _
      %p154 = scmp.lt.s32.totalorder %s19, 2
      // Predicated region
      $region17: #{tpu_custom_call.1} parent=5 // pred_check
        %p155 = pneg %p154
      $region18: #{tpu_custom_call.1} parent=5 // pred_check_branch
        %157 = sbr.rel (%p155) target = $region20
      $region19: #{tpu_custom_call.1} parent=5 // pred_region
        // Predicated region
        $region21: #{tpu_custom_call.1} parent=19 // pred_check
          %p158 = pneg %p74
        $region22: #{tpu_custom_call.1} parent=19 // pred_check_branch
          %160 = sbr.rel (%p158) target = $region24
        $region23: #{tpu_custom_call.1} parent=19 // pred_region
          %s161 = sand.u32 %s64, 1
          %s162 = scalar_lea.sflag [#allocation4], %s161
          %s163 = sand.u32 %s64, 1
          %s164 = smul.addr %s163, 32
          %s165 = scalar_lea.vmem [#allocation3], %s164
          %s167 = ssub.s32 512, 512
          %168 = vsyncadd %s162, %s167
          %s169 = smul.addr %s26, 4
          %s170 = sadd.s32 %s27, %s169
          %s171 = smul.addr %s170, 128
          %s172 = scalar_lea.hbm %s1, %s171
          %s173 = sshll.u32 %s165, 4
          %s174 = int_to_ptr.vmem [resolvable:$true] %s173
          %179 = dma.hbm_to_vmem [thread:$0]  %s172, 512, %s174, %s162, 128, 128, 8
        $region24: #{tpu_custom_call.1} parent=19 // pred_fallthru
          _
        // Predicated region
        $region25: #{tpu_custom_call.1} parent=19 // pred_check
          %p180 = pneg %p102
        $region26: #{tpu_custom_call.1} parent=19 // pred_check_branch
          %182 = sbr.rel (%p180) target = $region28
        $region27: #{tpu_custom_call.1} parent=19 // pred_region
          %s183 = sand.u32 %s92, 1
          %s184 = scalar_lea.sflag [#allocation7], %s183
          %s185 = sand.u32 %s92, 1
          %s186 = smul.addr %s185, 64
          %s187 = scalar_lea.vmem [#allocation6], %s186
          %s189 = ssub.s32 1024, 1024
          %190 = vsyncadd %s184, %s189
          %s191 = smul.addr %s26, 8
          %s192 = sadd.s32 %s27, %s191
          %s193 = smul.addr %s192, 128
          %s194 = scalar_lea.hbm %s2, %s193
          %s195 = sshll.u32 %s187, 4
          %s196 = int_to_ptr.vmem [resolvable:$true] %s195
          %201 = dma.hbm_to_vmem [thread:$0]  %s194, 1024, %s196, %s184, 128, 128, 8
        $region28: #{tpu_custom_call.1} parent=19 // pred_fallthru
          _
      $region20: #{tpu_custom_call.1} parent=5 // pred_fallthru
        _
      %p202 = scmp.le.s32.totalorder 1, %s19
      %p203 = scmp.lt.s32.totalorder %s19, 3
      %p204 = pnand %p202, %p203
      %p205 = pneg %p204
      // Predicated region
      $region29: #{tpu_custom_call.1} parent=5 // pred_check
        _
      $region30: #{tpu_custom_call.1} parent=5 // pred_check_branch
        %207 = sbr.rel (%p204) target = $region32
      $region31: #{tpu_custom_call.1} parent=5 // pred_region
        %s208 = ssub.s32 %s19, 1
        %s209 = sand.u32 %s67, 1
        %s210 = scalar_lea.sflag [#allocation4], %s209
        %s211 = sand.u32 %s67, 1
        %s212 = smul.addr %s211, 32
        %s213 = scalar_lea.vmem [#allocation3], %s212
        // Predicated region
        $region33: #{tpu_custom_call.1} parent=31 // pred_check
          %p214 = pneg %p80
        $region34: #{tpu_custom_call.1} parent=31 // pred_check_branch
          %216 = sbr.rel (%p214) target = $region36
        $region35: #{tpu_custom_call.1} parent=31 // pred_region
          %217 = dma.done %s210, 512
        $region36: #{tpu_custom_call.1} parent=31 // pred_fallthru
          _
        %s218 = sand.u32 %s95, 1
        %s219 = scalar_lea.sflag [#allocation7], %s218
        %s220 = sand.u32 %s95, 1
        %s221 = smul.addr %s220, 64
        %s222 = scalar_lea.vmem [#allocation6], %s221
        // Predicated region
        $region37: #{tpu_custom_call.1} parent=31 // pred_check
          %p223 = pneg %p108
        $region38: #{tpu_custom_call.1} parent=31 // pred_check_branch
          %225 = sbr.rel (%p223) target = $region40
        $region39: #{tpu_custom_call.1} parent=31 // pred_region
          %226 = dma.done %s219, 1024
        $region40: #{tpu_custom_call.1} parent=31 // pred_fallthru
          _
        %p227 = pneg %p52
        %p228 = pneg %p49
        %s229 = sand.u32 %s67, 1
        %s230 = scalar_lea.sflag [#allocation4], %s229
        %s231 = sand.u32 %s67, 1
        %s232 = smul.addr %s231, 32
        %s233 = scalar_lea.vmem [#allocation3], %s232
        %p234 = pneg %p80
        %p235 = pneg %p77
        %s236 = sand.u32 %s95, 1
        %s237 = scalar_lea.sflag [#allocation7], %s236
        %s238 = sand.u32 %s95, 1
        %s239 = smul.addr %s238, 64
        %s240 = scalar_lea.vmem [#allocation6], %s239
        %p241 = pneg %p108
        %p242 = pneg %p105
        %p243 = pneg %p136
        %p244 = pneg %p133
        %s245 = sand.u32 %s123, 1
        %s246 = scalar_lea.sflag [#allocation5], %s245
        %s247 = sand.u32 %s123, 1
        %s248 = smul.addr %s247, 8
        %s249 = scalar_lea.vmem [#allocation8], %s248
        %s250 = sld [smem:[#allocation2]]
        %s251 = sadd.f32 %s250, 1e-08
        %v252 = vstv %s251
        %v253 = vrcp.pop %v252
        %s254 = vtos %v253
        %v255 = vld [vmem:[%s213] sm:$0xff]
        %v256 = vld [vmem:[%s213 + $0x8] sm:$0xff]
        %v257 = vld [vmem:[%s213 + $0x10] sm:$0xff]
        %v258 = vld [vmem:[%s213 + $0x18] sm:$0xff]
        %v259 = vld [vmem:[%s222] sm:$0xff]
        %v260 = vld [vmem:[%s222 + $0x8] sm:$0xff]
        %v261 = vld [vmem:[%s222 + $0x10] sm:$0xff]
        %v262 = vld [vmem:[%s222 + $0x18] sm:$0xff]
        %v263 = vld [vmem:[%s222 + $0x20] sm:$0xff]
        %v264 = vld [vmem:[%s222 + $0x28] sm:$0xff]
        %v265 = vld [vmem:[%s222 + $0x30] sm:$0xff]
        %v266 = vld [vmem:[%s222 + $0x38] sm:$0xff]
        %v267 = vadd.f32 %v259, 1e-08
        %v268 = vadd.f32 %v260, 1e-08
        %v269 = vadd.f32 %v261, 1e-08
        %v270 = vadd.f32 %v262, 1e-08
        %v271 = vadd.f32 %v263, 1e-08
        %v272 = vadd.f32 %v264, 1e-08
        %v273 = vadd.f32 %v265, 1e-08
        %v274 = vadd.f32 %v266, 1e-08
        %v275 = vlog2.pop %v267
        %v276 = vmul.f32 %v275, 0.6931472
        %v277 = vlog2.pop %v268
        %v278 = vmul.f32 %v277, 0.6931472
        %v279 = vlog2.pop %v269
        %v280 = vmul.f32 %v279, 0.6931472
        %v281 = vlog2.pop %v270
        %v282 = vmul.f32 %v281, 0.6931472
        %v283 = vlog2.pop %v271
        %v284 = vmul.f32 %v283, 0.6931472
        %v285 = vlog2.pop %v272
        %v286 = vmul.f32 %v285, 0.6931472
        %v287 = vlog2.pop %v273
        %v288 = vmul.f32 %v287, 0.6931472
        %v289 = vlog2.pop %v274
        %v290 = vmul.f32 %v289, 0.6931472
        %v291 = vsub.f32 0.0, %v276
        %v292 = vsub.f32 0.0, %v278
        %v293 = vsub.f32 0.0, %v280
        %v294 = vsub.f32 0.0, %v282
        %v295 = vsub.f32 0.0, %v284
        %v296 = vsub.f32 0.0, %v286
        %v297 = vsub.f32 0.0, %v288
        %v298 = vsub.f32 0.0, %v290
        %v299 = vadd.f32 %v291, 1e-08
        %v300 = vadd.f32 %v292, 1e-08
        %v301 = vadd.f32 %v293, 1e-08
        %v302 = vadd.f32 %v294, 1e-08
        %v303 = vadd.f32 %v295, 1e-08
        %v304 = vadd.f32 %v296, 1e-08
        %v305 = vadd.f32 %v297, 1e-08
        %v306 = vadd.f32 %v298, 1e-08
        %v307 = vlog2.pop %v299
        %v308 = vmul.f32 %v307, 0.6931472
        %v309 = vlog2.pop %v300
        %v310 = vmul.f32 %v309, 0.6931472
        %v311 = vlog2.pop %v301
        %v312 = vmul.f32 %v311, 0.6931472
        %v313 = vlog2.pop %v302
        %v314 = vmul.f32 %v313, 0.6931472
        %v315 = vlog2.pop %v303
        %v316 = vmul.f32 %v315, 0.6931472
        %v317 = vlog2.pop %v304
        %v318 = vmul.f32 %v317, 0.6931472
        %v319 = vlog2.pop %v305
        %v320 = vmul.f32 %v319, 0.6931472
        %v321 = vlog2.pop %v306
        %v322 = vmul.f32 %v321, 0.6931472
        %v323 = vsub.f32 0.0, %v308
        %v324 = vsub.f32 0.0, %v310
        %v325 = vsub.f32 0.0, %v312
        %v326 = vsub.f32 0.0, %v314
        %v327 = vsub.f32 0.0, %v316
        %v328 = vsub.f32 0.0, %v318
        %v329 = vsub.f32 0.0, %v320
        %v330 = vsub.f32 0.0, %v322
        %v331 = vadd.f32 %v255, 1e-08
        %v332 = vadd.f32 %v256, 1e-08
        %v333 = vadd.f32 %v257, 1e-08
        %v334 = vadd.f32 %v258, 1e-08
        %v335 = vlog2.pop %v331
        %v336 = vmul.f32 %v335, 0.6931472
        %v337 = vlog2.pop %v332
        %v338 = vmul.f32 %v337, 0.6931472
        %v339 = vlog2.pop %v333
        %v340 = vmul.f32 %v339, 0.6931472
        %v341 = vlog2.pop %v334
        %v342 = vmul.f32 %v341, 0.6931472
        %v343 = vsub.f32 1.0, %v255
        %v344 = vsub.f32 1.0, %v256
        %v345 = vsub.f32 1.0, %v257
        %v346 = vsub.f32 1.0, %v258
        %v347 = vadd.f32 %v343, 1e-08
        %v348 = vadd.f32 %v344, 1e-08
        %v349 = vadd.f32 %v345, 1e-08
        %v350 = vadd.f32 %v346, 1e-08
        %v351 = vlog2.pop %v347
        %v352 = vmul.f32 %v351, 0.6931472
        %v353 = vlog2.pop %v348
        %v354 = vmul.f32 %v353, 0.6931472
        %v355 = vlog2.pop %v349
        %v356 = vmul.f32 %v355, 0.6931472
        %v357 = vlog2.pop %v350
        %v358 = vmul.f32 %v357, 0.6931472
        %v359 = vadd.f32 %v336, %v323
        %v360 = vadd.f32 %v338, %v324
        %v361 = vadd.f32 %v340, %v325
        %v362 = vadd.f32 %v342, %v326
        %v363 = vstv %s254
        %v364 = vmul.f32 %v359, %v363
        %v365 = vmul.f32 %v360, %v363
        %v366 = vmul.f32 %v361, %v363
        %v367 = vmul.f32 %v362, %v363
        %v368 = vadd.f32 %v352, %v327
        %v369 = vadd.f32 %v354, %v328
        %v370 = vadd.f32 %v356, %v329
        %v371 = vadd.f32 %v358, %v330
        %v372 = vmul.f32 %v368, %v363
        %v373 = vmul.f32 %v369, %v363
        %v374 = vmul.f32 %v370, %v363
        %v375 = vmul.f32 %v371, %v363
        %v376 = vmax.f32 %v364, %v365
        %v377 = vmax.f32 %v366, %v367
        %v378 = vmax.f32 %v376, %v377
        %v379 = vmax.f32 %v372, %v373
        %v380 = vmax.f32 %v374, %v375
        %v381 = vmax.f32 %v379, %v380
        %v382 = vmax.f32 %v378, %v381
        %v383 = vsub.f32 %v364, %v382
        %v384 = vsub.f32 %v365, %v382
        %v385 = vsub.f32 %v366, %v382
        %v386 = vsub.f32 %v367, %v382
        %v387 = vmul.f32 %v383, 1.442695
        %v388 = vpow.pop %v387
        %v389 = vmul.f32 %v384, 1.442695
        %v390 = vpow.pop %v389
        %v391 = vmul.f32 %v385, 1.442695
        %v392 = vpow.pop %v391
        %v393 = vmul.f32 %v386, 1.442695
        %v394 = vpow.pop %v393
        %v395 = vsub.f32 %v372, %v382
        %v396 = vsub.f32 %v373, %v382
        %v397 = vsub.f32 %v374, %v382
        %v398 = vsub.f32 %v375, %v382
        %v399 = vmul.f32 %v395, 1.442695
        %v400 = vpow.pop %v399
        %v401 = vmul.f32 %v396, 1.442695
        %v402 = vpow.pop %v401
        %v403 = vmul.f32 %v397, 1.442695
        %v404 = vpow.pop %v403
        %v405 = vmul.f32 %v398, 1.442695
        %v406 = vpow.pop %v405
        %v407 = vadd.f32 %v388, %v390
        %v408 = vadd.f32 %v407, %v392
        %v409 = vadd.f32 %v408, %v394
        %v410 = vadd.f32 %v400, %v402
        %v411 = vadd.f32 %v410, %v404
        %v412 = vadd.f32 %v411, %v406
        %v413 = vadd.f32 %v409, %v412
        %v414 = vrcp.pop %v413
        %v415 = vmul.f32 %v388, %v414
        %416 = vst [vmem:[%s249] sm:$0xff] %v415
        %s417 = sand.u32 %s123, 1
        %s418 = scalar_lea.sflag [#allocation5], %s417
        %s419 = sand.u32 %s123, 1
        %s420 = smul.addr %s419, 8
        %s421 = scalar_lea.vmem [#allocation8], %s420
        // Predicated region
        $region41: #{tpu_custom_call.1} parent=31 // pred_check
          %p422 = pneg %p133
        $region42: #{tpu_custom_call.1} parent=31 // pred_check_branch
          %424 = sbr.rel (%p422) target = $region44
        $region43: #{tpu_custom_call.1} parent=31 // pred_region
          %s426 = ssub.s32 128, 128
          %427 = vsyncadd %s418, %s426
          %s428 = sadd.s32 %s29, %s28
          %s429 = smul.addr %s428, 128
          %s430 = scalar_lea.hbm %s3, %s429
          %s432 = sshll.u32 %s421, 4
          %s433 = int_to_ptr.vmem [resolvable:$true] %s432
          %435 = dma.vmem_to_hbm [thread:$0]  %s433, 128, %s430, %s418
        $region44: #{tpu_custom_call.1} parent=31 // pred_fallthru
          _
      $region32: #{tpu_custom_call.1} parent=5 // pred_fallthru
        _
      %p436 = scmp.le.s32.totalorder 2, %s19
      // Predicated region
      $region45: #{tpu_custom_call.1} parent=5 // pred_check
        %p437 = pneg %p436
      $region46: #{tpu_custom_call.1} parent=5 // pred_check_branch
        %439 = sbr.rel (%p437) target = $region48
      $region47: #{tpu_custom_call.1} parent=5 // pred_region
        %s440 = ssub.s32 %s19, 2
        // Predicated region
        $region49: #{tpu_custom_call.1} parent=47 // pred_check
          %p441 = pneg %p139
        $region50: #{tpu_custom_call.1} parent=47 // pred_check_branch
          %443 = sbr.rel (%p441) target = $region52
        $region51: #{tpu_custom_call.1} parent=47 // pred_region
          %s444 = sand.u32 %s124, 1
          %s445 = scalar_lea.sflag [#allocation5], %s444
          %s446 = sand.u32 %s124, 1
          %s447 = smul.addr %s446, 8
          %s448 = scalar_lea.vmem [#allocation8], %s447
          %449 = dma.done %s445, 128
        $region52: #{tpu_custom_call.1} parent=47 // pred_fallthru
          _
      $region48: #{tpu_custom_call.1} parent=5 // pred_fallthru
        _
    $region6: #{tpu_custom_call.1} parent=1 // loop_footer
      %s23 = sadd.s32 1, %s19
    $region7: #{tpu_custom_call.1} parent=1 // loop_footer_branch
      %18 = sbr.rel target = $region3
    $region8: #{tpu_custom_call.1} parent=1 // loop_exit
      _
    %450 = vsyncpa [#allocation4], 1
    %s451 = scalar_lea.sflag [#allocation4], 1
    %452 = vsyncpa %s451, 1
    %453 = vsyncpa [#allocation7], 1
    %s454 = scalar_lea.sflag [#allocation7], 1
    %455 = vsyncpa %s454, 1
    %456 = vsyncpa [#allocation5], 1
    %s457 = scalar_lea.sflag [#allocation5], 1
    %458 = vsyncpa %s457, 1

</llo_original>
